<compile_context>
chip_gen: v5e
topology: v5e:2x2
jax: 0.10.0
libtpu: 0.0.40
codegen_flags: <defaults>
</compile_context>

<pallas_src>
from functools import partial

import jax
import jax.numpy as jnp
from jax.experimental import pallas as pl
from jax.experimental.pallas import tpu as pltpu


def self_attention_kernel(v_ref, wfused_ref, bo_ref, o_ref):
    """One grid step = a block of Nb batch rows.

    v_ref      : (Nb, Lv, E)   `values` rows for this batch block
    wfused_ref : (E, Lq*E)     fused weight  kron(I_heads, Wv^T) @ Wo^T, tiled Lq times
                               along columns so the store is lane-dense (Lq*E lanes)
    bo_ref     : (1, Lq*E)     fc_out bias tiled Lq times
    o_ref      : (Nb, Lq*E)    flattened (Lq, E) output rows for this batch block
    """
    # Sequence-sum of `values` (commutes with the linear projections).  Kept as an XLU
    # reduce so it does not lengthen the MXU dependency chain across pipelined steps.
    vbar = jnp.sum(v_ref[...], axis=1)                                    # (Nb, E)

    # Single fused MXU matmul: per-head V projection + fc_out + q-broadcast are all
    # folded into the pre-computed (E, Lq*E) weight.  Output row is 256 lanes -> dense vst.
    out = jnp.dot(vbar, wfused_ref[...],
                  preferred_element_type=jnp.float32) + bo_ref[...]       # (Nb, Lq*E)
    o_ref[...] = out.astype(o_ref.dtype)


def prepare_fused_weights(params, heads, query_len):
    """One-time (per weight set) fusion of the V projection and fc_out.

    Returns (w_fused_tiled, bo_tiled):
      w_fused_tiled : (E, Lq*E)  = kron(I_heads, Wv^T) @ Wo^T, tiled Lq times along cols
      bo_tiled      : (1, Lq*E)
    Hoist this out of the per-call path (or run the whole wrapper under jit so it
    constant-folds) -- at small sizes it costs as much as the kernel itself.
    """
    wv, wk, wq, wo, bo = params
    del wk, wq  # mathematically dead (see header note)
    E = wo.shape[0]
    wv_bd_t = jnp.kron(jnp.eye(heads, dtype=wv.dtype), wv.T)              # (E, E)
    w_fused = jnp.dot(wv_bd_t, wo.T)                                      # (E, E)
    w_fused_tiled = jnp.tile(w_fused, (1, query_len))                     # (E, Lq*E)
    bo_tiled = jnp.tile(bo.reshape(1, E), (1, query_len))                 # (1, Lq*E)
    return w_fused_tiled, bo_tiled


@partial(jax.jit, static_argnames=("heads", "block_batch"))
def self_attention(values, keys, queries, mask, params, heads, block_batch=128):
    """Wrapper with the same signature as the PyTorch module's forward.

    `keys`, `queries` (beyond their length) and `mask` do not affect the module's output
    (see header note), so they are not shipped to the kernel -- no wasted DMAs.

    block_batch: rows folded per grid step once N grows.  128 is safe on every
    generation (matches v5e 128x128 MXUs / its single vst slot); on v6e/v7x up to 256
    fills the 2x256^2 MXU -- VMEM is trivial here either way ((Nb, Lq*E) f32 output
    + (E, Lq*E) weight, double-buffered, well under the 32 MiB scoped default).
    """
    N, Lq, E = queries.shape
    Lv = values.shape[1]
    D = E // heads
    assert D * heads == E
    del keys, mask  # mathematically dead inputs

    # Fused weight prep -- under jit this constant-folds; cheap XLA ops either way.
    w_fused_tiled, bo_tiled = prepare_fused_weights(params, heads, Lq)

    # Batch folding: if the whole batch fits in one block, use it (grid=(1,)); otherwise
    # use multiple-of-8 blocks so the (sublane) dim of the output block stays aligned.
    if N <= block_batch:
        nb = N
    else:
        nb = block_batch
    grid = (pl.cdiv(N, nb),)

    out_flat = pl.pallas_call(
        self_attention_kernel,
        out_shape=jax.ShapeDtypeStruct((N, Lq * E), queries.dtype),
        grid_spec=pltpu.PrefetchScalarGridSpec(
            num_scalar_prefetch=0,
            grid=grid,
            in_specs=[
                pl.BlockSpec((nb, Lv, E), lambda n: (n, 0, 0)),
                pl.BlockSpec((E, Lq * E), lambda n: (0, 0)),
                pl.BlockSpec((1, Lq * E), lambda n: (0, 0)),
            ],
            out_specs=pl.BlockSpec((nb, Lq * E), lambda n: (n, 0)),
        ),
        compiler_params=pltpu.CompilerParams(
            dimension_semantics=("parallel",)),
    )(values, w_fused_tiled, bo_tiled)

    return out_flat.reshape(N, Lq, E)


def self_attention_reference(values, keys, queries, mask, params, heads):
    """Pure-JAX literal transcription of the PyTorch forward (for verification)."""
    wv, wk, wq, wo, bo = params
    N, Lq, E = queries.shape
    Lv, Lk = values.shape[1], keys.shape[1]
    D = E // heads
    v = values.reshape(N, Lv, heads, D) @ wv.T
    k = keys.reshape(N, Lk, heads, D) @ wk.T
    q = queries.reshape(N, Lq, heads, D) @ wq.T
    energy = jnp.einsum('nqhd,nkhd->nhqk', q, k)
    energy = jnp.where(mask == 0, -1e20, energy)
    att = jax.nn.softmax(energy / (E ** 0.5), axis=3)
    # literal einsum: 'k' and 'v' summed independently
    out = jnp.einsum('nhqk,nvhd->nqhd', att, v).reshape(N, Lq, E)
    return out @ wo.T + bo


if __name__ == "__main__":
    N, heads, D = 2, 4, 8
    E = heads * D          # embed_size = 32
    L = 8                  # value_len = key_len = query_len = 8

    key = jax.random.PRNGKey(0)
    ks = jax.random.split(key, 9)
    values = jax.random.normal(ks[0], (N, L, E), jnp.float32)
    keys_in = jax.random.normal(ks[1], (N, L, E), jnp.float32)
    queries = jax.random.normal(ks[2], (N, L, E), jnp.float32)
    # mask broadcastable to (N, heads, Lq, Lk); causal lower-triangular, 0/1
    mask = jnp.broadcast_to(
        jnp.tril(jnp.ones((L, L), jnp.float32))[None, None], (N, 1, L, L))

    bound = 1.0 / (D ** 0.5)
    wv = jax.random.uniform(ks[3], (D, D), jnp.float32, -bound, bound)
    wk = jax.random.uniform(ks[4], (D, D), jnp.float32, -bound, bound)
    wq = jax.random.uniform(ks[5], (D, D), jnp.float32, -bound, bound)
    bound_o = 1.0 / (E ** 0.5)
    wo = jax.random.uniform(ks[6], (E, E), jnp.float32, -bound_o, bound_o)
    bo = jax.random.uniform(ks[7], (E,), jnp.float32, -bound_o, bound_o)
    params = (wv, wk, wq, wo, bo)

    out = self_attention(values, keys_in, queries, mask, params, heads)
    out = jax.block_until_ready(out)

    ref = self_attention_reference(values, keys_in, queries, mask, params, heads)
    assert out.shape == (N, L, E)
    assert jnp.allclose(out, ref, rtol=1e-5, atol=1e-5), "mismatch vs JAX reference"

    print("KERNEL_OK")
</pallas_src>

<mosaic_0001>
module attributes {stable_mosaic.version = 11 : i64} {
  func.func @self_attention_kernel(%arg0: i32, %arg1: memref<2x8x32xf32, #tpu.memory_space<vmem>>, %arg2: memref<32x256xf32, #tpu.memory_space<vmem>>, %arg3: memref<1x256xf32, #tpu.memory_space<vmem>>, %arg4: memref<2x256xf32, #tpu.memory_space<vmem>>) attributes {dimension_semantics = [#tpu.dimension_semantics<parallel>], iteration_bounds = array<i64: 1>, scalar_prefetch = 0 : i64, scratch_operands = 0 : i64, tpu.core_type = #tpu.core_type<tc>, window_params = [{transform_indices = @transform_0, window_bounds = array<i64: 2, 8, 32>}, {pipeline_mode = #tpu.pipeline_mode<synchronous>, transform_indices = @transform_1, window_bounds = array<i64: 32, 256>}, {pipeline_mode = #tpu.pipeline_mode<synchronous>, transform_indices = @transform_2, window_bounds = array<i64: 1, 256>}, {transform_indices = @transform_3, window_bounds = array<i64: 2, 256>}]} {
    %c0 = arith.constant 0 : index
    %c0_0 = arith.constant 0 : index
    %c0_1 = arith.constant 0 : index
    %0 = vector.load %arg1[%c0, %c0_0, %c0_1] : memref<2x8x32xf32, #tpu.memory_space<vmem>>, vector<2x8x32xf32>
    %cst = arith.constant dense<0.000000e+00> : vector<2x32xf32>
    %1 = vector.multi_reduction <add>, %0, %cst [1] : vector<2x8x32xf32> to vector<2x32xf32>
    %c0_2 = arith.constant 0 : index
    %c0_3 = arith.constant 0 : index
    %2 = vector.load %arg2[%c0_2, %c0_3] : memref<32x256xf32, #tpu.memory_space<vmem>>, vector<32x256xf32>
    %cst_4 = arith.constant dense<0.000000e+00> : vector<2x256xf32>
    %3 = tpu.matmul %1, %2, %cst_4 {dimension_numbers = #tpu.dot_dimension_numbers<[1], [0], [0], [1], [0, 0, 1, 1], [], []>} : vector<2x32xf32>, vector<32x256xf32>, vector<2x256xf32> -> vector<2x256xf32>
    %c0_5 = arith.constant 0 : index
    %c0_6 = arith.constant 0 : index
    %4 = vector.load %arg3[%c0_5, %c0_6] : memref<1x256xf32, #tpu.memory_space<vmem>>, vector<1x256xf32>
    %5 = vector.broadcast %4 : vector<1x256xf32> to vector<2x256xf32>
    %6 = arith.addf %3, %5 : vector<2x256xf32>
    %c0_7 = arith.constant 0 : index
    %c0_8 = arith.constant 0 : index
    %7 = vector.load %arg4[%c0_7, %c0_8] : memref<2x256xf32, #tpu.memory_space<vmem>>, vector<2x256xf32>
    tpu.vector_store %arg4[%c0_7, %c0_8], %6 {strides = array<i32>} : memref<2x256xf32, #tpu.memory_space<vmem>>, vector<2x256xf32>,
    return
  }
  func.func @transform_0(%arg0: i32) -> (i32, i32, i32) {
    %c0_i32 = arith.constant 0 : i32
    %c0_i32_0 = arith.constant 0 : i32
    %c0_i32_1 = arith.constant 0 : i32
    return %arg0, %c0_i32, %c0_i32_0 : i32, i32, i32
  }
  func.func @transform_1(%arg0: i32) -> (i32, i32) {
    %c0_i32 = arith.constant 0 : i32
    %c0_i32_0 = arith.constant 0 : i32
    %c0_i32_1 = arith.constant 0 : i32
    return %c0_i32, %c0_i32_0 : i32, i32
  }
  func.func @transform_2(%arg0: i32) -> (i32, i32) {
    %c0_i32 = arith.constant 0 : i32
    %c0_i32_0 = arith.constant 0 : i32
    %c0_i32_1 = arith.constant 0 : i32
    return %c0_i32, %c0_i32_0 : i32, i32
  }
  func.func @transform_3(%arg0: i32) -> (i32, i32) {
    %c0_i32 = arith.constant 0 : i32
    %c0_i32_0 = arith.constant 0 : i32
    return %arg0, %c0_i32 : i32, i32
  }
}

</mosaic_0001>

<llo_original>
// kernel: tile.13
$region0: #{tile.13}
  %s0 = inlined_call_operand.vmem [shape: f32[32,8,32], index: 0, kind: input, shape index: {}]
  %s1 = inlined_call_operand.vmem [shape: f32[32,256], index: 1, kind: output, shape index: {}]
  %v2 = vld [vmem:[%s0] ss:$4 sm:$0xff]
  %vm3 = vcmask 261120
  %4 = vst.msk [vmem:[%s1] ss:$8 sm:$0x3] %vm3, %v2
  %s5 = scalar_lea.vmem %s1, 4294967281
  %6 = vst.msk [vmem:[%s5] ss:$8 sm:$0xc] %vm3, %v2
  %s7 = scalar_lea.vmem %s1, 4294967266
  %8 = vst.msk [vmem:[%s7] ss:$8 sm:$0x30] %vm3, %v2
  %s9 = scalar_lea.vmem %s1, 4294967251
  %10 = vst.msk [vmem:[%s9] ss:$8 sm:$0xc0] %vm3, %v2
  %s11 = scalar_lea.vmem %s0, 32
  %v12 = vld [vmem:[%s11] ss:$4 sm:$0xff]
  %vm13 = vcmask 261120
  %s14 = scalar_lea.vmem %s1, 4
  %15 = vst.msk [vmem:[%s14] ss:$8 sm:$0x3] %vm13, %v12
  %s16 = scalar_lea.vmem %s1, 4294967285
  %17 = vst.msk [vmem:[%s16] ss:$8 sm:$0xc] %vm13, %v12
  %s18 = scalar_lea.vmem %s1, 4294967270
  %19 = vst.msk [vmem:[%s18] ss:$8 sm:$0x30] %vm13, %v12
  %s20 = scalar_lea.vmem %s1, 4294967255
  %21 = vst.msk [vmem:[%s20] ss:$8 sm:$0xc0] %vm13, %v12
  %s22 = scalar_lea.vmem %s0, 64
  %v23 = vld [vmem:[%s22] ss:$4 sm:$0xff]
  %vm24 = vcmask 261120
  %s25 = scalar_lea.vmem %s1, 16
  %26 = vst.msk [vmem:[%s25] ss:$8 sm:$0x3] %vm24, %v23
  %s27 = scalar_lea.vmem %s1, 1
  %28 = vst.msk [vmem:[%s27] ss:$8 sm:$0xc] %vm24, %v23
  %s29 = scalar_lea.vmem %s1, 4294967282
  %30 = vst.msk [vmem:[%s29] ss:$8 sm:$0x30] %vm24, %v23
  %s31 = scalar_lea.vmem %s1, 4294967267
  %32 = vst.msk [vmem:[%s31] ss:$8 sm:$0xc0] %vm24, %v23
  %s33 = scalar_lea.vmem %s0, 96
  %v34 = vld [vmem:[%s33] ss:$4 sm:$0xff]
  %vm35 = vcmask 261120
  %s36 = scalar_lea.vmem %s1, 20
  %37 = vst.msk [vmem:[%s36] ss:$8 sm:$0x3] %vm35, %v34
  %s38 = scalar_lea.vmem %s1, 5
  %39 = vst.msk [vmem:[%s38] ss:$8 sm:$0xc] %vm35, %v34
  %s40 = scalar_lea.vmem %s1, 4294967286
  %41 = vst.msk [vmem:[%s40] ss:$8 sm:$0x30] %vm35, %v34
  %s42 = scalar_lea.vmem %s1, 4294967271
  %43 = vst.msk [vmem:[%s42] ss:$8 sm:$0xc0] %vm35, %v34
  %s44 = scalar_lea.vmem %s0, 128
  %v45 = vld [vmem:[%s44] ss:$4 sm:$0xff]
  %vm46 = vcmask 261120
  %s47 = scalar_lea.vmem %s1, 32
  %48 = vst.msk [vmem:[%s47] ss:$8 sm:$0x3] %vm46, %v45
  %s49 = scalar_lea.vmem %s1, 17
  %50 = vst.msk [vmem:[%s49] ss:$8 sm:$0xc] %vm46, %v45
  %s51 = scalar_lea.vmem %s1, 2
  %52 = vst.msk [vmem:[%s51] ss:$8 sm:$0x30] %vm46, %v45
  %s53 = scalar_lea.vmem %s1, 4294967283
  %54 = vst.msk [vmem:[%s53] ss:$8 sm:$0xc0] %vm46, %v45
  %s55 = scalar_lea.vmem %s0, 160
  %v56 = vld [vmem:[%s55] ss:$4 sm:$0xff]
  %vm57 = vcmask 261120
  %s58 = scalar_lea.vmem %s1, 36
  %59 = vst.msk [vmem:[%s58] ss:$8 sm:$0x3] %vm57, %v56
  %s60 = scalar_lea.vmem %s1, 21
  %61 = vst.msk [vmem:[%s60] ss:$8 sm:$0xc] %vm57, %v56
  %s62 = scalar_lea.vmem %s1, 6
  %63 = vst.msk [vmem:[%s62] ss:$8 sm:$0x30] %vm57, %v56
  %s64 = scalar_lea.vmem %s1, 4294967287
  %65 = vst.msk [vmem:[%s64] ss:$8 sm:$0xc0] %vm57, %v56
  %s66 = scalar_lea.vmem %s0, 192
  %v67 = vld [vmem:[%s66] ss:$4 sm:$0xff]
  %vm68 = vcmask 261120
  %s69 = scalar_lea.vmem %s1, 48
  %70 = vst.msk [vmem:[%s69] ss:$8 sm:$0x3] %vm68, %v67
  %s71 = scalar_lea.vmem %s1, 33
  %72 = vst.msk [vmem:[%s71] ss:$8 sm:$0xc] %vm68, %v67
  %s73 = scalar_lea.vmem %s1, 18
  %74 = vst.msk [vmem:[%s73] ss:$8 sm:$0x30] %vm68, %v67
  %s75 = scalar_lea.vmem %s1, 3
  %76 = vst.msk [vmem:[%s75] ss:$8 sm:$0xc0] %vm68, %v67
  %s77 = scalar_lea.vmem %s0, 224
  %v78 = vld [vmem:[%s77] ss:$4 sm:$0xff]
  %vm79 = vcmask 261120
  %s80 = scalar_lea.vmem %s1, 52
  %81 = vst.msk [vmem:[%s80] ss:$8 sm:$0x3] %vm79, %v78
  %s82 = scalar_lea.vmem %s1, 37
  %83 = vst.msk [vmem:[%s82] ss:$8 sm:$0xc] %vm79, %v78
  %s84 = scalar_lea.vmem %s1, 22
  %85 = vst.msk [vmem:[%s84] ss:$8 sm:$0x30] %vm79, %v78
  %s86 = scalar_lea.vmem %s1, 7
  %87 = vst.msk [vmem:[%s86] ss:$8 sm:$0xc0] %vm79, %v78
  %s88 = scalar_lea.vmem %s0, 3
  %v89 = vld [vmem:[%s88] ss:$8 sm:$0xf]
  %s90 = scalar_lea.vmem %s0, 3
  %v91 = vld [vmem:[%s90] ss:$8 sm:$0xf0]
  %vm92 = vcmask 1047556
  %v93 = vsel %vm92, %v91, %v89
  %94 = vrot.lane.b32.xlu0 %v93, 96
  %v95 = vpop.permute.xlu0 %94
  %vm96 = vcmask 1048320
  %97 = vst.msk [vmem:[%s1] sm:$0xff] %vm96, %v95
  %s98 = scalar_lea.vmem %s0, 131
  %v99 = vld [vmem:[%s98] ss:$8 sm:$0xf]
  %s100 = scalar_lea.vmem %s0, 131
  %v101 = vld [vmem:[%s100] ss:$8 sm:$0xf0]
  %vm102 = vcmask 1047556
  %v103 = vsel %vm102, %v101, %v99
  %104 = vrot.lane.b32.xlu0 %v103, 96
  %v105 = vpop.permute.xlu0 %104
  %vm106 = vcmask 1048320
  %s107 = scalar_lea.vmem %s1, 32
  %108 = vst.msk [vmem:[%s107] sm:$0xff] %vm106, %v105
  %s109 = scalar_lea.vmem %s0, 7
  %v110 = vld [vmem:[%s109] ss:$8 sm:$0xf]
  %s111 = scalar_lea.vmem %s0, 7
  %v112 = vld [vmem:[%s111] ss:$8 sm:$0xf0]
  %vm113 = vcmask 1047556
  %v114 = vsel %vm113, %v112, %v110
  %115 = vrot.lane.b32.xlu0 %v114, 96
  %v116 = vpop.permute.xlu0 %115
  %vm117 = vcmask 1048320
  %s118 = scalar_lea.vmem %s1, 8
  %119 = vst.msk [vmem:[%s118] sm:$0xff] %vm117, %v116
  %s120 = scalar_lea.vmem %s0, 135
  %v121 = vld [vmem:[%s120] ss:$8 sm:$0xf]
  %s122 = scalar_lea.vmem %s0, 135
  %v123 = vld [vmem:[%s122] ss:$8 sm:$0xf0]
  %vm124 = vcmask 1047556
  %v125 = vsel %vm124, %v123, %v121
  %126 = vrot.lane.b32.xlu0 %v125, 96
  %v127 = vpop.permute.xlu0 %126
  %vm128 = vcmask 1048320
  %s129 = scalar_lea.vmem %s1, 40
  %130 = vst.msk [vmem:[%s129] sm:$0xff] %vm128, %v127
  %s131 = scalar_lea.vmem %s0, 67
  %v132 = vld [vmem:[%s131] ss:$8 sm:$0xf]
  %s133 = scalar_lea.vmem %s0, 67
  %v134 = vld [vmem:[%s133] ss:$8 sm:$0xf0]
  %vm135 = vcmask 1047556
  %v136 = vsel %vm135, %v134, %v132
  %137 = vrot.lane.b32.xlu0 %v136, 96
  %v138 = vpop.permute.xlu0 %137
  %vm139 = vcmask 1048320
  %s140 = scalar_lea.vmem %s1, 16
  %141 = vst.msk [vmem:[%s140] sm:$0xff] %vm139, %v138
  %s142 = scalar_lea.vmem %s0, 195
  %v143 = vld [vmem:[%s142] ss:$8 sm:$0xf]
  %s144 = scalar_lea.vmem %s0, 195
  %v145 = vld [vmem:[%s144] ss:$8 sm:$0xf0]
  %vm146 = vcmask 1047556
  %v147 = vsel %vm146, %v145, %v143
  %148 = vrot.lane.b32.xlu0 %v147, 96
  %v149 = vpop.permute.xlu0 %148
  %vm150 = vcmask 1048320
  %s151 = scalar_lea.vmem %s1, 48
  %152 = vst.msk [vmem:[%s151] sm:$0xff] %vm150, %v149
  %s153 = scalar_lea.vmem %s0, 71
  %v154 = vld [vmem:[%s153] ss:$8 sm:$0xf]
  %s155 = scalar_lea.vmem %s0, 71
  %v156 = vld [vmem:[%s155] ss:$8 sm:$0xf0]
  %vm157 = vcmask 1047556
  %v158 = vsel %vm157, %v156, %v154
  %159 = vrot.lane.b32.xlu0 %v158, 96
  %v160 = vpop.permute.xlu0 %159
  %vm161 = vcmask 1048320
  %s162 = scalar_lea.vmem %s1, 24
  %163 = vst.msk [vmem:[%s162] sm:$0xff] %vm161, %v160
  %s164 = scalar_lea.vmem %s0, 199
  %v165 = vld [vmem:[%s164] ss:$8 sm:$0xf]
  %s166 = scalar_lea.vmem %s0, 199
  %v167 = vld [vmem:[%s166] ss:$8 sm:$0xf0]
  %vm168 = vcmask 1047556
  %v169 = vsel %vm168, %v167, %v165
  %170 = vrot.lane.b32.xlu0 %v169, 96
  %v171 = vpop.permute.xlu0 %170
  %vm172 = vcmask 1048320
  %s173 = scalar_lea.vmem %s1, 56
  %174 = vst.msk [vmem:[%s173] sm:$0xff] %vm172, %v171
  %s175 = scalar_lea.vmem %s0, 2
  %v176 = vld [vmem:[%s175] ss:$8 sm:$0xf]
  %s177 = scalar_lea.vmem %s0, 2
  %v178 = vld [vmem:[%s177] ss:$8 sm:$0xf0]
  %vm179 = vcmask 1047556
  %v180 = vsel %vm179, %v178, %v176
  %181 = vrot.lane.b32.xlu0 %v180, 64
  %v182 = vpop.permute.xlu0 %181
  %vm183 = vcmask 785920
  %184 = vst.msk [vmem:[%s1] sm:$0xff] %vm183, %v182
  %s185 = scalar_lea.vmem %s0, 130
  %v186 = vld [vmem:[%s185] ss:$8 sm:$0xf]
  %s187 = scalar_lea.vmem %s0, 130
  %v188 = vld [vmem:[%s187] ss:$8 sm:$0xf0]
  %vm189 = vcmask 1047556
  %v190 = vsel %vm189, %v188, %v186
  %191 = vrot.lane.b32.xlu0 %v190, 64
  %v192 = vpop.permute.xlu0 %191
  %vm193 = vcmask 785920
  %s194 = scalar_lea.vmem %s1, 32
  %195 = vst.msk [vmem:[%s194] sm:$0xff] %vm193, %v192
  %s196 = scalar_lea.vmem %s0, 6
  %v197 = vld [vmem:[%s196] ss:$8 sm:$0xf]
  %s198 = scalar_lea.vmem %s0, 6
  %v199 = vld [vmem:[%s198] ss:$8 sm:$0xf0]
  %vm200 = vcmask 1047556
  %v201 = vsel %vm200, %v199, %v197
  %202 = vrot.lane.b32.xlu0 %v201, 64
  %v203 = vpop.permute.xlu0 %202
  %vm204 = vcmask 785920
  %s205 = scalar_lea.vmem %s1, 8
  %206 = vst.msk [vmem:[%s205] sm:$0xff] %vm204, %v203
  %s207 = scalar_lea.vmem %s0, 134
  %v208 = vld [vmem:[%s207] ss:$8 sm:$0xf]
  %s209 = scalar_lea.vmem %s0, 134
  %v210 = vld [vmem:[%s209] ss:$8 sm:$0xf0]
  %vm211 = vcmask 1047556
  %v212 = vsel %vm211, %v210, %v208
  %213 = vrot.lane.b32.xlu0 %v212, 64
  %v214 = vpop.permute.xlu0 %213
  %vm215 = vcmask 785920
  %s216 = scalar_lea.vmem %s1, 40
  %217 = vst.msk [vmem:[%s216] sm:$0xff] %vm215, %v214
  %s218 = scalar_lea.vmem %s0, 66
  %v219 = vld [vmem:[%s218] ss:$8 sm:$0xf]
  %s220 = scalar_lea.vmem %s0, 66
  %v221 = vld [vmem:[%s220] ss:$8 sm:$0xf0]
  %vm222 = vcmask 1047556
  %v223 = vsel %vm222, %v221, %v219
  %224 = vrot.lane.b32.xlu0 %v223, 64
  %v225 = vpop.permute.xlu0 %224
  %vm226 = vcmask 785920
  %s227 = scalar_lea.vmem %s1, 16
  %228 = vst.msk [vmem:[%s227] sm:$0xff] %vm226, %v225
  %s229 = scalar_lea.vmem %s0, 194
  %v230 = vld [vmem:[%s229] ss:$8 sm:$0xf]
  %s231 = scalar_lea.vmem %s0, 194
  %v232 = vld [vmem:[%s231] ss:$8 sm:$0xf0]
  %vm233 = vcmask 1047556
  %v234 = vsel %vm233, %v232, %v230
  %235 = vrot.lane.b32.xlu0 %v234, 64
  %v236 = vpop.permute.xlu0 %235
  %vm237 = vcmask 785920
  %s238 = scalar_lea.vmem %s1, 48
  %239 = vst.msk [vmem:[%s238] sm:$0xff] %vm237, %v236
  %s240 = scalar_lea.vmem %s0, 70
  %v241 = vld [vmem:[%s240] ss:$8 sm:$0xf]
  %s242 = scalar_lea.vmem %s0, 70
  %v243 = vld [vmem:[%s242] ss:$8 sm:$0xf0]
  %vm244 = vcmask 1047556
  %v245 = vsel %vm244, %v243, %v241
  %246 = vrot.lane.b32.xlu0 %v245, 64
  %v247 = vpop.permute.xlu0 %246
  %vm248 = vcmask 785920
  %s249 = scalar_lea.vmem %s1, 24
  %250 = vst.msk [vmem:[%s249] sm:$0xff] %vm248, %v247
  %s251 = scalar_lea.vmem %s0, 198
  %v252 = vld [vmem:[%s251] ss:$8 sm:$0xf]
  %s253 = scalar_lea.vmem %s0, 198
  %v254 = vld [vmem:[%s253] ss:$8 sm:$0xf0]
  %vm255 = vcmask 1047556
  %v256 = vsel %vm255, %v254, %v252
  %257 = vrot.lane.b32.xlu0 %v256, 64
  %v258 = vpop.permute.xlu0 %257
  %vm259 = vcmask 785920
  %s260 = scalar_lea.vmem %s1, 56
  %261 = vst.msk [vmem:[%s260] sm:$0xff] %vm259, %v258
  %s262 = scalar_lea.vmem %s0, 1
  %v263 = vld [vmem:[%s262] ss:$8 sm:$0xf]
  %s264 = scalar_lea.vmem %s0, 1
  %v265 = vld [vmem:[%s264] ss:$8 sm:$0xf0]
  %vm266 = vcmask 1047556
  %v267 = vsel %vm266, %v265, %v263
  %268 = vrot.lane.b32.xlu0 %v267, 32
  %v269 = vpop.permute.xlu0 %268
  %vm270 = vcmask 523520
  %271 = vst.msk [vmem:[%s1] sm:$0xff] %vm270, %v269
  %s272 = scalar_lea.vmem %s0, 129
  %v273 = vld [vmem:[%s272] ss:$8 sm:$0xf]
  %s274 = scalar_lea.vmem %s0, 129
  %v275 = vld [vmem:[%s274] ss:$8 sm:$0xf0]
  %vm276 = vcmask 1047556
  %v277 = vsel %vm276, %v275, %v273
  %278 = vrot.lane.b32.xlu0 %v277, 32
  %v279 = vpop.permute.xlu0 %278
  %vm280 = vcmask 523520
  %s281 = scalar_lea.vmem %s1, 32
  %282 = vst.msk [vmem:[%s281] sm:$0xff] %vm280, %v279
  %s283 = scalar_lea.vmem %s0, 5
  %v284 = vld [vmem:[%s283] ss:$8 sm:$0xf]
  %s285 = scalar_lea.vmem %s0, 5
  %v286 = vld [vmem:[%s285] ss:$8 sm:$0xf0]
  %vm287 = vcmask 1047556
  %v288 = vsel %vm287, %v286, %v284
  %289 = vrot.lane.b32.xlu0 %v288, 32
  %v290 = vpop.permute.xlu0 %289
  %vm291 = vcmask 523520
  %s292 = scalar_lea.vmem %s1, 8
  %293 = vst.msk [vmem:[%s292] sm:$0xff] %vm291, %v290
  %s294 = scalar_lea.vmem %s0, 133
  %v295 = vld [vmem:[%s294] ss:$8 sm:$0xf]
  %s296 = scalar_lea.vmem %s0, 133
  %v297 = vld [vmem:[%s296] ss:$8 sm:$0xf0]
  %vm298 = vcmask 1047556
  %v299 = vsel %vm298, %v297, %v295
  %300 = vrot.lane.b32.xlu0 %v299, 32
  %v301 = vpop.permute.xlu0 %300
  %vm302 = vcmask 523520
  %s303 = scalar_lea.vmem %s1, 40
  %304 = vst.msk [vmem:[%s303] sm:$0xff] %vm302, %v301
  %s305 = scalar_lea.vmem %s0, 65
  %v306 = vld [vmem:[%s305] ss:$8 sm:$0xf]
  %s307 = scalar_lea.vmem %s0, 65
  %v308 = vld [vmem:[%s307] ss:$8 sm:$0xf0]
  %vm309 = vcmask 1047556
  %v310 = vsel %vm309, %v308, %v306
  %311 = vrot.lane.b32.xlu0 %v310, 32
  %v312 = vpop.permute.xlu0 %311
  %vm313 = vcmask 523520
  %s314 = scalar_lea.vmem %s1, 16
  %315 = vst.msk [vmem:[%s314] sm:$0xff] %vm313, %v312
  %s316 = scalar_lea.vmem %s0, 193
  %v317 = vld [vmem:[%s316] ss:$8 sm:$0xf]
  %s318 = scalar_lea.vmem %s0, 193
  %v319 = vld [vmem:[%s318] ss:$8 sm:$0xf0]
  %vm320 = vcmask 1047556
  %v321 = vsel %vm320, %v319, %v317
  %322 = vrot.lane.b32.xlu0 %v321, 32
  %v323 = vpop.permute.xlu0 %322
  %vm324 = vcmask 523520
  %s325 = scalar_lea.vmem %s1, 48
  %326 = vst.msk [vmem:[%s325] sm:$0xff] %vm324, %v323
  %s327 = scalar_lea.vmem %s0, 69
  %v328 = vld [vmem:[%s327] ss:$8 sm:$0xf]
  %s329 = scalar_lea.vmem %s0, 69
  %v330 = vld [vmem:[%s329] ss:$8 sm:$0xf0]
  %vm331 = vcmask 1047556
  %v332 = vsel %vm331, %v330, %v328
  %333 = vrot.lane.b32.xlu0 %v332, 32
  %v334 = vpop.permute.xlu0 %333
  %vm335 = vcmask 523520
  %s336 = scalar_lea.vmem %s1, 24
  %337 = vst.msk [vmem:[%s336] sm:$0xff] %vm335, %v334
  %s338 = scalar_lea.vmem %s0, 197
  %v339 = vld [vmem:[%s338] ss:$8 sm:$0xf]
  %s340 = scalar_lea.vmem %s0, 197
  %v341 = vld [vmem:[%s340] ss:$8 sm:$0xf0]
  %vm342 = vcmask 1047556
  %v343 = vsel %vm342, %v341, %v339
  %344 = vrot.lane.b32.xlu0 %v343, 32
  %v345 = vpop.permute.xlu0 %344
  %vm346 = vcmask 523520
  %s347 = scalar_lea.vmem %s1, 56
  %348 = vst.msk [vmem:[%s347] sm:$0xff] %vm346, %v345

// kernel: self_attention.1
$region0: #{self_attention.1}
  #allocation0 [shape = 'u32[]', space=smem, size = 0x4, offset = 0x4, fixed_abs, tag = 'smem constant byte address 0x4 - core index']
  #allocation1 [shape = 'u32[72,128]{1,0:T(1,128)}', space=vmem, size = 0x9000, scoped, tag = 'internal scratch']
  %s0 = inlined_call_operand.vmem [shape: f32[2,8,32], index: 0, kind: input, shape index: {}]
  %s1 = inlined_call_operand.vmem [shape: f32[32,256], index: 1, kind: input, shape index: {}]
  %s2 = inlined_call_operand.vmem [shape: f32[1,256], index: 2, kind: input, shape index: {}]
  %s3 = inlined_call_operand.vmem [shape: f32[2,256], index: 3, kind: output, shape index: {}]
  %s4 = sld [smem:[#allocation0]]
  $region22: #{self_attention.1} parent=0
    _
  %s6 = ssub.s32 1, %s4
  %s7 = scalar_select 0, %s6, %s4
  // Predicated region
  $region2: #{self_attention.1} parent=0 // pred_check
    _
  $region3: #{self_attention.1} parent=0 // pred_check_branch
    %9 = sbr.rel (0) target = $region5
  $region4: #{self_attention.1} parent=0 // pred_region
    _
  $region5: #{self_attention.1} parent=0 // pred_fallthru
    _
  // Predicated region
  $region6: #{self_attention.1} parent=0 // pred_check
    _
  $region7: #{self_attention.1} parent=0 // pred_check_branch
    %11 = sbr.rel (0) target = $region9
  $region8: #{self_attention.1} parent=0 // pred_region
    _
  $region9: #{self_attention.1} parent=0 // pred_fallthru
    _
  // Predicated region
  $region10: #{self_attention.1} parent=0 // pred_check
    _
  $region11: #{self_attention.1} parent=0 // pred_check_branch
    %13 = sbr.rel (0) target = $region13
  $region12: #{self_attention.1} parent=0 // pred_region
    _
  $region13: #{self_attention.1} parent=0 // pred_fallthru
    _
  %v14 = vld [vmem:[%s0] sm:$0xff]
  %v15 = vld [vmem:[%s0 + $0x8] sm:$0xff]
  %vm16 = vcmask 261120
  %v17 = vsel %vm16, %v14, 0.0
  %v18 = vrot.slane %v17, 4
  %v19 = vadd.f32 %v17, %v18
  %v20 = vrot.slane %v19, 2
  %v21 = vadd.f32 %v19, %v20
  %v22 = vrot.slane %v21, 1
  %v23 = vadd.f32 %v21, %v22
  %v24 = vsel %vm16, %v15, 0.0
  %v25 = vrot.slane %v24, 4
  %v26 = vadd.f32 %v24, %v25
  %v27 = vrot.slane %v26, 2
  %v28 = vadd.f32 %v26, %v27
  %v29 = vrot.slane %v28, 1
  %v30 = vadd.f32 %v28, %v29
  %v31 = vld [vmem:[%s1] sm:$0xff]
  %v32 = vld [vmem:[%s1 + $0x8] sm:$0xff]
  %v33 = vld [vmem:[%s1 + $0x10] sm:$0xff]
  %v34 = vld [vmem:[%s1 + $0x18] sm:$0xff]
  %v35 = vld [vmem:[%s1 + $0x20] sm:$0xff]
  %v36 = vld [vmem:[%s1 + $0x28] sm:$0xff]
  %v37 = vld [vmem:[%s1 + $0x30] sm:$0xff]
  %v38 = vld [vmem:[%s1 + $0x38] sm:$0xff]
  %v39 = vld [vmem:[%s2] sm:$0x3]
  %v41 = vperm.slane %v39, 0
  %v42 = vperm.slane %v39, 1
  %vm47 = vcmask 1041409
  %v48 = vsel %vm47, %v30, %v23
  %v49 = vsel %vm16, %v48, 0
  %51 = vmatpush.msra.mxu0 0.0
  %52 = vmatpush.msra.mxu0 0.0
  %53 = vmatpush.msra.mxu0 0.0
  %54 = vmatpush.msra.mxu0 0.0
  %55 = vmatpush.msra.mxu0 0.0
  %56 = vmatpush.msra.mxu0 0.0
  %57 = vmatpush.msra.mxu0 0.0
  %58 = vmatpush.msra.mxu0 0.0
  %59 = vmatpush.msra.mxu0 0.0
  %60 = vmatpush.msra.mxu0 0.0
  %61 = vmatpush.msra.mxu0 0.0
  %62 = vmatpush.msra.mxu0 0.0
  %63 = vmatpush.msra.mxu0 %v37
  %64 = vmatpush.msra.mxu0 %v35
  %65 = vmatpush.msra.mxu0 %v33
  %66 = vmatpush.msra.mxu0 %v31
  %67 = vmatmul.f32.gmra.mxu0 %v49
  %v68 = vpop.f32.mrf.mxu0
  %v69 = vadd.f32 %v41, %v68
  %70 = vdwg.mxu0
  %71 = vmatpush.msra.mxu0 0.0
  %72 = vmatpush.msra.mxu0 0.0
  %73 = vmatpush.msra.mxu0 0.0
  %74 = vmatpush.msra.mxu0 0.0
  %75 = vmatpush.msra.mxu0 0.0
  %76 = vmatpush.msra.mxu0 0.0
  %77 = vmatpush.msra.mxu0 0.0
  %78 = vmatpush.msra.mxu0 0.0
  %79 = vmatpush.msra.mxu0 0.0
  %80 = vmatpush.msra.mxu0 0.0
  %81 = vmatpush.msra.mxu0 0.0
  %82 = vmatpush.msra.mxu0 0.0
  %83 = vmatpush.msra.mxu0 %v38
  %84 = vmatpush.msra.mxu0 %v36
  %85 = vmatpush.msra.mxu0 %v34
  %86 = vmatpush.msra.mxu0 %v32
  %87 = vmatmul.f32.gmra.mxu0 %v49
  %v88 = vpop.f32.mrf.mxu0
  %v89 = vadd.f32 %v42, %v88
  %90 = vdwg.mxu0
  %v93 = vrot.slane %v89, 6
  %vm94 = vcmask 1041408
  %v95 = vsel %vm94, %v69, %v93
  %97 = vst [vmem:[%s3] sm:$0xf] %v95
  // Predicated region
  $region14: #{self_attention.1} parent=0 // pred_check
    _
  $region15: #{self_attention.1} parent=0 // pred_check_branch
    %99 = sbr.rel (0) target = $region17
  $region16: #{self_attention.1} parent=0 // pred_region
    _
  $region17: #{self_attention.1} parent=0 // pred_fallthru
    _
  // Predicated region
  $region18: #{self_attention.1} parent=0 // pred_check
    _
  $region19: #{self_attention.1} parent=0 // pred_check_branch
    %101 = sbr.rel (0) target = $region21
  $region20: #{self_attention.1} parent=0 // pred_region
    _
  $region21: #{self_attention.1} parent=0 // pred_fallthru
    _

</llo_original>
